<compile_context>
chip_gen: v6e
topology: v6e:2x2x1
jax: 0.10.0
libtpu: 0.0.40
codegen_flags: <defaults>
</compile_context>

<pallas_src>
import functools
import math

import jax
import jax.numpy as jnp
from jax.experimental import pallas as pl
from jax.experimental.pallas import tpu as pltpu

DECAY = 0.25
INIT_THRE = 1.0   # thresholds are init_thre + {0,1,...,D-1}; unit spacing by construction
D = 4             # number of thresholds


def _round_up(x, m):
    return ((x + m - 1) // m) * m


def _pack(dtype):
    """Rows packed per 32-bit sublane group for this dtype (f32:1, bf16:2, int8:4)."""
    return max(1, 4 // jnp.dtype(dtype).itemsize)


def _choose_tiles(T, N, in_dtype, out_dtype, fl_cap, tm_cap, tt_cap, vmem_budget):
    """Pick (FL, R, R_pad, tm, TT) — exact divisors whenever possible (no HBM padding)."""
    in_isz = jnp.dtype(in_dtype).itemsize
    out_isz = jnp.dtype(out_dtype).itemsize
    sub = 8 * max(_pack(in_dtype), _pack(out_dtype))   # sublane granularity for packed access

    # ---- lane width FL: multiple of 128; prefer exact divisors of N with sub-aligned R.
    if N % 128 == 0:
        best = None
        for f in range(128, min(N, fl_cap) + 1, 128):
            if N % f:
                continue
            r = N // f
            key = (r % sub == 0, r % 8 == 0, f)
            if best is None or key > best[0]:
                best = (key, f)
        FL = best[1]
    else:
        FL = min(_round_up(N, 128), _round_up(fl_cap, 128))
    R = _round_up(N, FL) // FL

    # ---- timestep block TT: largest exact divisor of T (no padded timesteps).
    TT = 1
    for t in range(1, min(T, tt_cap) + 1):
        if T % t == 0:
            TT = t

    # ---- sublane tile tm: exact divisor of R, packing-aligned, within the VMEM budget.
    def vmem_bytes(tm_):
        return 2 * TT * tm_ * FL * (in_isz + out_isz) + tm_ * FL * 4

    def cands(step):
        out = []
        m = step
        while m <= min(R, tm_cap):
            if R % m == 0 and vmem_bytes(m) <= vmem_budget:
                out.append(m)
            m += step
        return out

    c = cands(sub) or cands(8)
    if c:
        # prefer >=2 m-blocks (ideally even) so the "parallel" axis shards across TCs,
        # then the largest tile.
        tm = max(c, key=lambda m: (R // m >= 2, (R // m) % 2 == 0, m))
        R_pad = R
    elif R <= 8:
        tm, R_pad = R, R                      # tiny problem: full-dim block (legal)
    else:
        tm = max(8, min(tm_cap, sub))
        while vmem_bytes(tm) > vmem_budget and tm > 8:
            tm -= 8
        R_pad = _round_up(R, tm)              # ragged fallback only
    return FL, R, R_pad, tm, TT


def _msf_kernel(TT, CH, shift, x_ref, out_ref, mem_ref):
    """One (TT, tm, FL) tile. grid = (m_blocks, t_blocks); t is innermost/sequential."""
    @pl.when(pl.program_id(1) == 0)
    def _():
        # Fresh carry per m-block: mem=0 makes the generic recurrence reproduce the
        # PyTorch i==0 branch (mem = x[0]) exactly.
        mem_ref[...] = jnp.zeros_like(mem_ref)

    tm = mem_ref.shape[0]
    for c in range(tm // CH):                  # sublane chunks: mem stays vreg-resident
        rows = pl.ds(c * CH, CH)               # static slice -> free
        mem = mem_ref[rows, :]
        for tt in range(TT):                   # short, fully unrolled time loop
            x_t = x_ref[tt, rows, :].astype(jnp.float32)
            # mask(spike_{t-1} > 0) == (mem_{t-1} >= INIT_THRE): fused reset/decay/add.
            mem = jnp.where(mem >= INIT_THRE, x_t, mem * DECAY + x_t)
            m = mem if shift == 0.0 else mem - shift
            # closed form of sum_k (mem >= INIT_THRE + k), k = 0..D-1 (unit spacing).
            spike = jnp.minimum(jnp.maximum(jnp.floor(m), 0.0), float(D))
            out_ref[tt, rows, :] = spike.astype(out_ref.dtype)
        mem_ref[rows, :] = mem


@functools.partial(jax.jit, static_argnames=("out_dtype", "fl_cap", "tm_cap", "tt_cap"))
def mem_update_msf(x, *, out_dtype=None, fl_cap=2048, tm_cap=64, tt_cap=8):
    """x: [T, B, C, H, W] -> spike counts in {0..D}, dtype = out_dtype (default x.dtype)."""
    T = x.shape[0]
    N = math.prod(x.shape[1:])
    in_dtype = x.dtype
    out_dtype = jnp.dtype(in_dtype) if out_dtype is None else jnp.dtype(out_dtype)

    FL, R, R_pad, tm, TT = _choose_tiles(
        T, N, in_dtype, out_dtype, fl_cap, tm_cap, tt_cap, vmem_budget=20 << 20)
    sub = 8 * max(_pack(in_dtype), _pack(out_dtype))
    CH = sub if (sub <= tm and tm % sub == 0) else tm

    x2 = x.reshape(T, N)                       # native dtype; no astype copy
    pad_n = R_pad * FL - N
    if pad_n:
        # TODO(synk): ragged tails are zero-padded in HBM (extra copy); this only
        # triggers when B*C*H*W is not a nice multiple of 128.
        x2 = jnp.pad(x2, ((0, 0), (0, pad_n)))
    x3 = x2.reshape(T, R_pad, FL)

    m_blocks = R_pad // tm
    t_blocks = T // TT
    shift = float(INIT_THRE) - 1.0
    in_isz = jnp.dtype(in_dtype).itemsize
    out_isz = jnp.dtype(out_dtype).itemsize

    out3 = pl.pallas_call(
        functools.partial(_msf_kernel, TT, CH, shift),
        out_shape=jax.ShapeDtypeStruct((T, R_pad, FL), out_dtype),
        grid_spec=pltpu.PrefetchScalarGridSpec(
            num_scalar_prefetch=0,
            grid=(m_blocks, t_blocks),
            in_specs=[pl.BlockSpec((TT, tm, FL), lambda m, t: (t, m, 0))],
            out_specs=pl.BlockSpec((TT, tm, FL), lambda m, t: (t, m, 0)),
            scratch_shapes=[pltpu.VMEM((tm, FL), jnp.float32)],   # membrane carry
        ),
        compiler_params=pltpu.CompilerParams(
            # m blocks independent (megacore-shardable); t is a true recurrence.
            dimension_semantics=("parallel", "arbitrary"),
            vmem_limit_bytes=32 << 20,
        ),
        cost_estimate=pl.CostEstimate(
            flops=5 * T * R_pad * FL,
            transcendentals=0,
            bytes_accessed=T * R_pad * FL * (in_isz + out_isz),
        ),
    )(x3)

    out = out3.reshape(T, R_pad * FL)
    if pad_n:
        out = out[:, :N]
    return out.reshape(x.shape)


def _reference(x):
    """Pure-JAX mirror of the PyTorch forward (explicit 4-compare spike form, f32)."""
    x = x.astype(jnp.float32)

    def step(carry, xt):
        mem_old, spike_old = carry
        mask = (spike_old > 0.0).astype(jnp.float32)
        mem = mem_old * DECAY * (1.0 - mask) + xt        # with mem_old=0 -> mem = x[0]
        spike = sum((mem >= (INIT_THRE + float(k))).astype(jnp.float32) for k in range(D))
        return (mem, spike), spike

    init = (jnp.zeros_like(x[0]), jnp.zeros_like(x[0]))
    _, out = jax.lax.scan(step, init, x)
    return out


# TODO(synk): only the forward pass is implemented; the surrogate-gradient backward
# rules (ActFun_rectangular/sigmoid/atan/gaussian) are not translated.

if __name__ == "__main__":
    key = jax.random.PRNGKey(0)
    T, B, C, H, W = 8, 2, 4, 16, 16
    # Scale so membrane potentials cross several thresholds.
    x = 2.5 * jax.random.normal(key, (T, B, C, H, W), dtype=jnp.float32)
    # Plant exact-threshold values (parity of the clip/floor closed form vs 4-compare
    # reference at threshold-equality points).
    x = x.at[0, 0, 0, 0, :4].set(jnp.array([1.0, 2.0, 3.0, 4.0], jnp.float32))

    ref = jax.block_until_ready(_reference(x))

    # f32 in -> f32 out (matches the PyTorch module's float output exactly).
    out = jax.block_until_ready(mem_update_msf(x))
    assert out.shape == x.shape and out.dtype == jnp.float32
    assert bool(jnp.array_equal(out, ref)), "mismatch vs reference (f32 path)"

    # Narrow-dtype path: bf16 activations in, bf16 spike counts out (exact for 0..4;
    # halves HBM traffic on this bandwidth-bound kernel).
    x_bf16 = x.astype(jnp.bfloat16)
    out_bf16 = jax.block_until_ready(mem_update_msf(x_bf16))
    ref_bf16 = jax.block_until_ready(_reference(x_bf16))
    assert out_bf16.dtype == jnp.bfloat16
    assert bool(jnp.array_equal(out_bf16.astype(jnp.float32), ref_bf16)), \
        "mismatch vs reference (bf16 path)"

    print("KERNEL_OK")
</pallas_src>

<mosaic_0001>
module attributes {stable_mosaic.version = 11 : i64} {
  func.func @_msf_kernel(%arg0: i32, %arg1: i32, %arg2: memref<8x8x256xf32, #tpu.memory_space<vmem>>, %arg3: memref<8x8x256xf32, #tpu.memory_space<vmem>>, %arg4: memref<8x256xf32, #tpu.memory_space<vmem>>) attributes {dimension_semantics = [#tpu.dimension_semantics<parallel>, #tpu.dimension_semantics<arbitrary>], iteration_bounds = array<i64: 1, 1>, scalar_prefetch = 0 : i64, scratch_operands = 1 : i64, tpu.core_type = #tpu.core_type<tc>, window_params = [{transform_indices = @transform_0, window_bounds = array<i64: 8, 8, 256>}, {transform_indices = @transform_1, window_bounds = array<i64: 8, 8, 256>}]} {
    %c0_i32 = arith.constant 0 : i32
    %0 = arith.cmpi eq, %arg1, %c0_i32 : i32
    %1 = arith.extui %0 : i1 to i32
    %c0_i32_0 = arith.constant 0 : i32
    %2 = arith.cmpi ne, %1, %c0_i32_0 : i32
    scf.if %2 {
      %cst_76 = arith.constant 0.000000e+00 : f32
      %133 = vector.broadcast %cst_76 : f32 to vector<8x256xf32>
      %c0_77 = arith.constant 0 : index
      %c0_78 = arith.constant 0 : index
      %134 = vector.load %arg4[%c0_77, %c0_78] : memref<8x256xf32, #tpu.memory_space<vmem>>, vector<8x256xf32>
      tpu.vector_store %arg4[%c0_77, %c0_78], %133 {strides = array<i32>} : memref<8x256xf32, #tpu.memory_space<vmem>>, vector<8x256xf32>,
    } else {
    }
    %c0 = arith.constant 0 : index
    %c0_1 = arith.constant 0 : index
    %3 = vector.load %arg4[%c0, %c0_1] : memref<8x256xf32, #tpu.memory_space<vmem>>, vector<8x256xf32>
    %c0_2 = arith.constant 0 : index
    %c0_3 = arith.constant 0 : index
    %c0_4 = arith.constant 0 : index
    %4 = vector.load %arg2[%c0_2, %c0_3, %c0_4] : memref<8x8x256xf32, #tpu.memory_space<vmem>>, vector<1x8x256xf32>
    %5 = vector.shape_cast %4 : vector<1x8x256xf32> to vector<8x256xf32>
    %cst = arith.constant 1.000000e+00 : f32
    %6 = vector.broadcast %cst : f32 to vector<8x256xf32>
    %7 = arith.cmpf oge, %3, %6 : vector<8x256xf32>
    %cst_5 = arith.constant 2.500000e-01 : f32
    %8 = vector.broadcast %cst_5 : f32 to vector<8x256xf32>
    %9 = arith.mulf %3, %8 : vector<8x256xf32>
    %10 = arith.addf %9, %5 : vector<8x256xf32>
    %11 = arith.select %7, %5, %10 : vector<8x256xi1>, vector<8x256xf32>
    %12 = math.floor %11 : vector<8x256xf32>
    %cst_6 = arith.constant 0.000000e+00 : f32
    %13 = vector.broadcast %cst_6 : f32 to vector<8x256xf32>
    %14 = arith.maximumf %12, %13 : vector<8x256xf32>
    %cst_7 = arith.constant 4.000000e+00 : f32
    %15 = vector.broadcast %cst_7 : f32 to vector<8x256xf32>
    %16 = arith.minimumf %14, %15 : vector<8x256xf32>
    %c0_8 = arith.constant 0 : index
    %c0_9 = arith.constant 0 : index
    %c0_10 = arith.constant 0 : index
    %17 = vector.load %arg3[%c0_8, %c0_9, %c0_10] : memref<8x8x256xf32, #tpu.memory_space<vmem>>, vector<1x8x256xf32>
    %18 = vector.shape_cast %17 : vector<1x8x256xf32> to vector<8x256xf32>
    %19 = vector.shape_cast %16 : vector<8x256xf32> to vector<1x8x256xf32>
    tpu.vector_store %arg3[%c0_8, %c0_9, %c0_10], %19 {strides = array<i32>} : memref<8x8x256xf32, #tpu.memory_space<vmem>>, vector<1x8x256xf32>,
    %c1 = arith.constant 1 : index
    %c0_11 = arith.constant 0 : index
    %c0_12 = arith.constant 0 : index
    %20 = vector.load %arg2[%c1, %c0_11, %c0_12] : memref<8x8x256xf32, #tpu.memory_space<vmem>>, vector<1x8x256xf32>
    %21 = vector.shape_cast %20 : vector<1x8x256xf32> to vector<8x256xf32>
    %cst_13 = arith.constant 1.000000e+00 : f32
    %22 = vector.broadcast %cst_13 : f32 to vector<8x256xf32>
    %23 = arith.cmpf oge, %11, %22 : vector<8x256xf32>
    %cst_14 = arith.constant 2.500000e-01 : f32
    %24 = vector.broadcast %cst_14 : f32 to vector<8x256xf32>
    %25 = arith.mulf %11, %24 : vector<8x256xf32>
    %26 = arith.addf %25, %21 : vector<8x256xf32>
    %27 = arith.select %23, %21, %26 : vector<8x256xi1>, vector<8x256xf32>
    %28 = math.floor %27 : vector<8x256xf32>
    %cst_15 = arith.constant 0.000000e+00 : f32
    %29 = vector.broadcast %cst_15 : f32 to vector<8x256xf32>
    %30 = arith.maximumf %28, %29 : vector<8x256xf32>
    %cst_16 = arith.constant 4.000000e+00 : f32
    %31 = vector.broadcast %cst_16 : f32 to vector<8x256xf32>
    %32 = arith.minimumf %30, %31 : vector<8x256xf32>
    %c1_17 = arith.constant 1 : index
    %c0_18 = arith.constant 0 : index
    %c0_19 = arith.constant 0 : index
    %33 = vector.load %arg3[%c1_17, %c0_18, %c0_19] : memref<8x8x256xf32, #tpu.memory_space<vmem>>, vector<1x8x256xf32>
    %34 = vector.shape_cast %33 : vector<1x8x256xf32> to vector<8x256xf32>
    %35 = vector.shape_cast %32 : vector<8x256xf32> to vector<1x8x256xf32>
    tpu.vector_store %arg3[%c1_17, %c0_18, %c0_19], %35 {strides = array<i32>} : memref<8x8x256xf32, #tpu.memory_space<vmem>>, vector<1x8x256xf32>,
    %c2 = arith.constant 2 : index
    %c0_20 = arith.constant 0 : index
    %c0_21 = arith.constant 0 : index
    %36 = vector.load %arg2[%c2, %c0_20, %c0_21] : memref<8x8x256xf32, #tpu.memory_space<vmem>>, vector<1x8x256xf32>
    %37 = vector.shape_cast %36 : vector<1x8x256xf32> to vector<8x256xf32>
    %cst_22 = arith.constant 1.000000e+00 : f32
    %38 = vector.broadcast %cst_22 : f32 to vector<8x256xf32>
    %39 = arith.cmpf oge, %27, %38 : vector<8x256xf32>
    %cst_23 = arith.constant 2.500000e-01 : f32
    %40 = vector.broadcast %cst_23 : f32 to vector<8x256xf32>
    %41 = arith.mulf %27, %40 : vector<8x256xf32>
    %42 = arith.addf %41, %37 : vector<8x256xf32>
    %43 = arith.select %39, %37, %42 : vector<8x256xi1>, vector<8x256xf32>
    %44 = math.floor %43 : vector<8x256xf32>
    %cst_24 = arith.constant 0.000000e+00 : f32
    %45 = vector.broadcast %cst_24 : f32 to vector<8x256xf32>
    %46 = arith.maximumf %44, %45 : vector<8x256xf32>
    %cst_25 = arith.constant 4.000000e+00 : f32
    %47 = vector.broadcast %cst_25 : f32 to vector<8x256xf32>
    %48 = arith.minimumf %46, %47 : vector<8x256xf32>
    %c2_26 = arith.constant 2 : index
    %c0_27 = arith.constant 0 : index
    %c0_28 = arith.constant 0 : index
    %49 = vector.load %arg3[%c2_26, %c0_27, %c0_28] : memref<8x8x256xf32, #tpu.memory_space<vmem>>, vector<1x8x256xf32>
    %50 = vector.shape_cast %49 : vector<1x8x256xf32> to vector<8x256xf32>
    %51 = vector.shape_cast %48 : vector<8x256xf32> to vector<1x8x256xf32>
    tpu.vector_store %arg3[%c2_26, %c0_27, %c0_28], %51 {strides = array<i32>} : memref<8x8x256xf32, #tpu.memory_space<vmem>>, vector<1x8x256xf32>,
    %c3 = arith.constant 3 : index
    %c0_29 = arith.constant 0 : index
    %c0_30 = arith.constant 0 : index
    %52 = vector.load %arg2[%c3, %c0_29, %c0_30] : memref<8x8x256xf32, #tpu.memory_space<vmem>>, vector<1x8x256xf32>
    %53 = vector.shape_cast %52 : vector<1x8x256xf32> to vector<8x256xf32>
    %cst_31 = arith.constant 1.000000e+00 : f32
    %54 = vector.broadcast %cst_31 : f32 to vector<8x256xf32>
    %55 = arith.cmpf oge, %43, %54 : vector<8x256xf32>
    %cst_32 = arith.constant 2.500000e-01 : f32
    %56 = vector.broadcast %cst_32 : f32 to vector<8x256xf32>
    %57 = arith.mulf %43, %56 : vector<8x256xf32>
    %58 = arith.addf %57, %53 : vector<8x256xf32>
    %59 = arith.select %55, %53, %58 : vector<8x256xi1>, vector<8x256xf32>
    %60 = math.floor %59 : vector<8x256xf32>
    %cst_33 = arith.constant 0.000000e+00 : f32
    %61 = vector.broadcast %cst_33 : f32 to vector<8x256xf32>
    %62 = arith.maximumf %60, %61 : vector<8x256xf32>
    %cst_34 = arith.constant 4.000000e+00 : f32
    %63 = vector.broadcast %cst_34 : f32 to vector<8x256xf32>
    %64 = arith.minimumf %62, %63 : vector<8x256xf32>
    %c3_35 = arith.constant 3 : index
    %c0_36 = arith.constant 0 : index
    %c0_37 = arith.constant 0 : index
    %65 = vector.load %arg3[%c3_35, %c0_36, %c0_37] : memref<8x8x256xf32, #tpu.memory_space<vmem>>, vector<1x8x256xf32>
    %66 = vector.shape_cast %65 : vector<1x8x256xf32> to vector<8x256xf32>
    %67 = vector.shape_cast %64 : vector<8x256xf32> to vector<1x8x256xf32>
    tpu.vector_store %arg3[%c3_35, %c0_36, %c0_37], %67 {strides = array<i32>} : memref<8x8x256xf32, #tpu.memory_space<vmem>>, vector<1x8x256xf32>,
    %c4 = arith.constant 4 : index
    %c0_38 = arith.constant 0 : index
    %c0_39 = arith.constant 0 : index
    %68 = vector.load %arg2[%c4, %c0_38, %c0_39] : memref<8x8x256xf32, #tpu.memory_space<vmem>>, vector<1x8x256xf32>
    %69 = vector.shape_cast %68 : vector<1x8x256xf32> to vector<8x256xf32>
    %cst_40 = arith.constant 1.000000e+00 : f32
    %70 = vector.broadcast %cst_40 : f32 to vector<8x256xf32>
    %71 = arith.cmpf oge, %59, %70 : vector<8x256xf32>
    %cst_41 = arith.constant 2.500000e-01 : f32
    %72 = vector.broadcast %cst_41 : f32 to vector<8x256xf32>
    %73 = arith.mulf %59, %72 : vector<8x256xf32>
    %74 = arith.addf %73, %69 : vector<8x256xf32>
    %75 = arith.select %71, %69, %74 : vector<8x256xi1>, vector<8x256xf32>
    %76 = math.floor %75 : vector<8x256xf32>
    %cst_42 = arith.constant 0.000000e+00 : f32
    %77 = vector.broadcast %cst_42 : f32 to vector<8x256xf32>
    %78 = arith.maximumf %76, %77 : vector<8x256xf32>
    %cst_43 = arith.constant 4.000000e+00 : f32
    %79 = vector.broadcast %cst_43 : f32 to vector<8x256xf32>
    %80 = arith.minimumf %78, %79 : vector<8x256xf32>
    %c4_44 = arith.constant 4 : index
    %c0_45 = arith.constant 0 : index
    %c0_46 = arith.constant 0 : index
    %81 = vector.load %arg3[%c4_44, %c0_45, %c0_46] : memref<8x8x256xf32, #tpu.memory_space<vmem>>, vector<1x8x256xf32>
    %82 = vector.shape_cast %81 : vector<1x8x256xf32> to vector<8x256xf32>
    %83 = vector.shape_cast %80 : vector<8x256xf32> to vector<1x8x256xf32>
    tpu.vector_store %arg3[%c4_44, %c0_45, %c0_46], %83 {strides = array<i32>} : memref<8x8x256xf32, #tpu.memory_space<vmem>>, vector<1x8x256xf32>,
    %c5 = arith.constant 5 : index
    %c0_47 = arith.constant 0 : index
    %c0_48 = arith.constant 0 : index
    %84 = vector.load %arg2[%c5, %c0_47, %c0_48] : memref<8x8x256xf32, #tpu.memory_space<vmem>>, vector<1x8x256xf32>
    %85 = vector.shape_cast %84 : vector<1x8x256xf32> to vector<8x256xf32>
    %cst_49 = arith.constant 1.000000e+00 : f32
    %86 = vector.broadcast %cst_49 : f32 to vector<8x256xf32>
    %87 = arith.cmpf oge, %75, %86 : vector<8x256xf32>
    %cst_50 = arith.constant 2.500000e-01 : f32
    %88 = vector.broadcast %cst_50 : f32 to vector<8x256xf32>
    %89 = arith.mulf %75, %88 : vector<8x256xf32>
    %90 = arith.addf %89, %85 : vector<8x256xf32>
    %91 = arith.select %87, %85, %90 : vector<8x256xi1>, vector<8x256xf32>
    %92 = math.floor %91 : vector<8x256xf32>
    %cst_51 = arith.constant 0.000000e+00 : f32
    %93 = vector.broadcast %cst_51 : f32 to vector<8x256xf32>
    %94 = arith.maximumf %92, %93 : vector<8x256xf32>
    %cst_52 = arith.constant 4.000000e+00 : f32
    %95 = vector.broadcast %cst_52 : f32 to vector<8x256xf32>
    %96 = arith.minimumf %94, %95 : vector<8x256xf32>
    %c5_53 = arith.constant 5 : index
    %c0_54 = arith.constant 0 : index
    %c0_55 = arith.constant 0 : index
    %97 = vector.load %arg3[%c5_53, %c0_54, %c0_55] : memref<8x8x256xf32, #tpu.memory_space<vmem>>, vector<1x8x256xf32>
    %98 = vector.shape_cast %97 : vector<1x8x256xf32> to vector<8x256xf32>
    %99 = vector.shape_cast %96 : vector<8x256xf32> to vector<1x8x256xf32>
    tpu.vector_store %arg3[%c5_53, %c0_54, %c0_55], %99 {strides = array<i32>} : memref<8x8x256xf32, #tpu.memory_space<vmem>>, vector<1x8x256xf32>,
    %c6 = arith.constant 6 : index
    %c0_56 = arith.constant 0 : index
    %c0_57 = arith.constant 0 : index
    %100 = vector.load %arg2[%c6, %c0_56, %c0_57] : memref<8x8x256xf32, #tpu.memory_space<vmem>>, vector<1x8x256xf32>
    %101 = vector.shape_cast %100 : vector<1x8x256xf32> to vector<8x256xf32>
    %cst_58 = arith.constant 1.000000e+00 : f32
    %102 = vector.broadcast %cst_58 : f32 to vector<8x256xf32>
    %103 = arith.cmpf oge, %91, %102 : vector<8x256xf32>
    %cst_59 = arith.constant 2.500000e-01 : f32
    %104 = vector.broadcast %cst_59 : f32 to vector<8x256xf32>
    %105 = arith.mulf %91, %104 : vector<8x256xf32>
    %106 = arith.addf %105, %101 : vector<8x256xf32>
    %107 = arith.select %103, %101, %106 : vector<8x256xi1>, vector<8x256xf32>
    %108 = math.floor %107 : vector<8x256xf32>
    %cst_60 = arith.constant 0.000000e+00 : f32
    %109 = vector.broadcast %cst_60 : f32 to vector<8x256xf32>
    %110 = arith.maximumf %108, %109 : vector<8x256xf32>
    %cst_61 = arith.constant 4.000000e+00 : f32
    %111 = vector.broadcast %cst_61 : f32 to vector<8x256xf32>
    %112 = arith.minimumf %110, %111 : vector<8x256xf32>
    %c6_62 = arith.constant 6 : index
    %c0_63 = arith.constant 0 : index
    %c0_64 = arith.constant 0 : index
    %113 = vector.load %arg3[%c6_62, %c0_63, %c0_64] : memref<8x8x256xf32, #tpu.memory_space<vmem>>, vector<1x8x256xf32>
    %114 = vector.shape_cast %113 : vector<1x8x256xf32> to vector<8x256xf32>
    %115 = vector.shape_cast %112 : vector<8x256xf32> to vector<1x8x256xf32>
    tpu.vector_store %arg3[%c6_62, %c0_63, %c0_64], %115 {strides = array<i32>} : memref<8x8x256xf32, #tpu.memory_space<vmem>>, vector<1x8x256xf32>,
    %c7 = arith.constant 7 : index
    %c0_65 = arith.constant 0 : index
    %c0_66 = arith.constant 0 : index
    %116 = vector.load %arg2[%c7, %c0_65, %c0_66] : memref<8x8x256xf32, #tpu.memory_space<vmem>>, vector<1x8x256xf32>
    %117 = vector.shape_cast %116 : vector<1x8x256xf32> to vector<8x256xf32>
    %cst_67 = arith.constant 1.000000e+00 : f32
    %118 = vector.broadcast %cst_67 : f32 to vector<8x256xf32>
    %119 = arith.cmpf oge, %107, %118 : vector<8x256xf32>
    %cst_68 = arith.constant 2.500000e-01 : f32
    %120 = vector.broadcast %cst_68 : f32 to vector<8x256xf32>
    %121 = arith.mulf %107, %120 : vector<8x256xf32>
    %122 = arith.addf %121, %117 : vector<8x256xf32>
    %123 = arith.select %119, %117, %122 : vector<8x256xi1>, vector<8x256xf32>
    %124 = math.floor %123 : vector<8x256xf32>
    %cst_69 = arith.constant 0.000000e+00 : f32
    %125 = vector.broadcast %cst_69 : f32 to vector<8x256xf32>
    %126 = arith.maximumf %124, %125 : vector<8x256xf32>
    %cst_70 = arith.constant 4.000000e+00 : f32
    %127 = vector.broadcast %cst_70 : f32 to vector<8x256xf32>
    %128 = arith.minimumf %126, %127 : vector<8x256xf32>
    %c7_71 = arith.constant 7 : index
    %c0_72 = arith.constant 0 : index
    %c0_73 = arith.constant 0 : index
    %129 = vector.load %arg3[%c7_71, %c0_72, %c0_73] : memref<8x8x256xf32, #tpu.memory_space<vmem>>, vector<1x8x256xf32>
    %130 = vector.shape_cast %129 : vector<1x8x256xf32> to vector<8x256xf32>
    %131 = vector.shape_cast %128 : vector<8x256xf32> to vector<1x8x256xf32>
    tpu.vector_store %arg3[%c7_71, %c0_72, %c0_73], %131 {strides = array<i32>} : memref<8x8x256xf32, #tpu.memory_space<vmem>>, vector<1x8x256xf32>,
    %c0_74 = arith.constant 0 : index
    %c0_75 = arith.constant 0 : index
    %132 = vector.load %arg4[%c0_74, %c0_75] : memref<8x256xf32, #tpu.memory_space<vmem>>, vector<8x256xf32>
    tpu.vector_store %arg4[%c0_74, %c0_75], %123 {strides = array<i32>} : memref<8x256xf32, #tpu.memory_space<vmem>>, vector<8x256xf32>,
    return
  }
  func.func @transform_0(%arg0: i32, %arg1: i32) -> (i32, i32, i32) {
    %c0_i32 = arith.constant 0 : i32
    %c0_i32_0 = arith.constant 0 : i32
    return %arg1, %arg0, %c0_i32 : i32, i32, i32
  }
  func.func @transform_1(%arg0: i32, %arg1: i32) -> (i32, i32, i32) {
    %c0_i32 = arith.constant 0 : i32
    %c0_i32_0 = arith.constant 0 : i32
    return %arg1, %arg0, %c0_i32 : i32, i32, i32
  }
}

</mosaic_0001>

<llo_original>
// kernel: mem_update_msf.1
$region0: #{mem_update_msf.1}
  #allocation0 [shape = 'u32[]', space=smem, size = 0x4, offset = 0x4, fixed_abs, tag = 'smem constant byte address 0x4 - core index']
  #allocation1 [shape = 'u32[144,128]{1,0:T(1,128)}', space=vmem, size = 0x12000, scoped, tag = 'internal scratch']
  #allocation2 [shape = 'f32[8,256]{1,0:T(8,128)}', space=vmem, size = 0x2000, scoped, tag = 'scratch operand']
  %s0 = inlined_call_operand.vmem [shape: f32[8,8,256], index: 0, kind: input, shape index: {}]
  %s1 = inlined_call_operand.vmem [shape: f32[8,8,256], index: 1, kind: output, shape index: {}]
  %s2 = sld [smem:[#allocation0]]
  $region18: #{mem_update_msf.1} parent=0
    _
  %s4 = ssub.s32 1, %s2
  %s5 = scalar_select 0, %s4, %s2
  // Predicated region
  $region2: #{mem_update_msf.1} parent=0 // pred_check
    _
  $region3: #{mem_update_msf.1} parent=0 // pred_check_branch
    %7 = sbr.rel (0) target = $region5
  $region4: #{mem_update_msf.1} parent=0 // pred_region
    _
  $region5: #{mem_update_msf.1} parent=0 // pred_fallthru
    _
  %p8 = scmp.eq.s32.totalorder 0, 0
  // Predicated region
  $region6: #{mem_update_msf.1} parent=0 // pred_check
    %p9 = pneg %p8
  $region7: #{mem_update_msf.1} parent=0 // pred_check_branch
    %11 = sbr.rel (%p9) target = $region9
  $region8: #{mem_update_msf.1} parent=0 // pred_region
    %12 = vst [vmem:[#allocation2] sm:$0xff] 0.0
    %13 = vst [vmem:[#allocation2 + $0x8] sm:$0xff] 0.0
  $region9: #{mem_update_msf.1} parent=0 // pred_fallthru
    _
  %v14 = vld [vmem:[#allocation2] sm:$0xff]
  %v15 = vld [vmem:[#allocation2 + $0x8] sm:$0xff]
  %v16 = vld [vmem:[%s0] sm:$0xff]
  %v17 = vld [vmem:[%s0 + $0x8] sm:$0xff]
  %vm18 = vcmp.ge.f32.partialorder %v14, 1.0
  %vm19 = vcmp.ge.f32.partialorder %v15, 1.0
  %v20 = vmul.f32 %v14, 0.25
  %v21 = vmul.f32 %v15, 0.25
  %v22 = vadd.f32 %v20, %v16
  %v23 = vadd.f32 %v21, %v17
  %v24 = vsel %vm18, %v16, %v22
  %v25 = vsel %vm19, %v17, %v23
  %v26 = vfloor.f32 %v24
  %v27 = vfloor.f32 %v25
  %v28 = vmax.f32 %v26, 0.0
  %v29 = vmax.f32 %v27, 0.0
  %v30 = vmin.f32 %v28, 4.0
  %v31 = vmin.f32 %v29, 4.0
  %32 = vst [vmem:[%s1] sm:$0xff] %v30
  %33 = vst [vmem:[%s1 + $0x8] sm:$0xff] %v31
  %s34 = scalar_lea.vmem %s0, 16
  %v35 = vld [vmem:[%s34] sm:$0xff]
  %v36 = vld [vmem:[%s34 + $0x8] sm:$0xff]
  %vm37 = vcmp.ge.f32.partialorder %v24, 1.0
  %vm38 = vcmp.ge.f32.partialorder %v25, 1.0
  %v39 = vmul.f32 %v24, 0.25
  %v40 = vmul.f32 %v25, 0.25
  %v41 = vadd.f32 %v39, %v35
  %v42 = vadd.f32 %v40, %v36
  %v43 = vsel %vm37, %v35, %v41
  %v44 = vsel %vm38, %v36, %v42
  %v45 = vfloor.f32 %v43
  %v46 = vfloor.f32 %v44
  %v47 = vmax.f32 %v45, 0.0
  %v48 = vmax.f32 %v46, 0.0
  %v49 = vmin.f32 %v47, 4.0
  %v50 = vmin.f32 %v48, 4.0
  %s51 = scalar_lea.vmem %s1, 16
  %52 = vst [vmem:[%s51] sm:$0xff] %v49
  %53 = vst [vmem:[%s51 + $0x8] sm:$0xff] %v50
  %s54 = scalar_lea.vmem %s0, 32
  %v55 = vld [vmem:[%s54] sm:$0xff]
  %v56 = vld [vmem:[%s54 + $0x8] sm:$0xff]
  %vm57 = vcmp.ge.f32.partialorder %v43, 1.0
  %vm58 = vcmp.ge.f32.partialorder %v44, 1.0
  %v59 = vmul.f32 %v43, 0.25
  %v60 = vmul.f32 %v44, 0.25
  %v61 = vadd.f32 %v59, %v55
  %v62 = vadd.f32 %v60, %v56
  %v63 = vsel %vm57, %v55, %v61
  %v64 = vsel %vm58, %v56, %v62
  %v65 = vfloor.f32 %v63
  %v66 = vfloor.f32 %v64
  %v67 = vmax.f32 %v65, 0.0
  %v68 = vmax.f32 %v66, 0.0
  %v69 = vmin.f32 %v67, 4.0
  %v70 = vmin.f32 %v68, 4.0
  %s71 = scalar_lea.vmem %s1, 32
  %72 = vst [vmem:[%s71] sm:$0xff] %v69
  %73 = vst [vmem:[%s71 + $0x8] sm:$0xff] %v70
  %s74 = scalar_lea.vmem %s0, 48
  %v75 = vld [vmem:[%s74] sm:$0xff]
  %v76 = vld [vmem:[%s74 + $0x8] sm:$0xff]
  %vm77 = vcmp.ge.f32.partialorder %v63, 1.0
  %vm78 = vcmp.ge.f32.partialorder %v64, 1.0
  %v79 = vmul.f32 %v63, 0.25
  %v80 = vmul.f32 %v64, 0.25
  %v81 = vadd.f32 %v79, %v75
  %v82 = vadd.f32 %v80, %v76
  %v83 = vsel %vm77, %v75, %v81
  %v84 = vsel %vm78, %v76, %v82
  %v85 = vfloor.f32 %v83
  %v86 = vfloor.f32 %v84
  %v87 = vmax.f32 %v85, 0.0
  %v88 = vmax.f32 %v86, 0.0
  %v89 = vmin.f32 %v87, 4.0
  %v90 = vmin.f32 %v88, 4.0
  %s91 = scalar_lea.vmem %s1, 48
  %92 = vst [vmem:[%s91] sm:$0xff] %v89
  %93 = vst [vmem:[%s91 + $0x8] sm:$0xff] %v90
  %s94 = scalar_lea.vmem %s0, 64
  %v95 = vld [vmem:[%s94] sm:$0xff]
  %v96 = vld [vmem:[%s94 + $0x8] sm:$0xff]
  %vm97 = vcmp.ge.f32.partialorder %v83, 1.0
  %vm98 = vcmp.ge.f32.partialorder %v84, 1.0
  %v99 = vmul.f32 %v83, 0.25
  %v100 = vmul.f32 %v84, 0.25
  %v101 = vadd.f32 %v99, %v95
  %v102 = vadd.f32 %v100, %v96
  %v103 = vsel %vm97, %v95, %v101
  %v104 = vsel %vm98, %v96, %v102
  %v105 = vfloor.f32 %v103
  %v106 = vfloor.f32 %v104
  %v107 = vmax.f32 %v105, 0.0
  %v108 = vmax.f32 %v106, 0.0
  %v109 = vmin.f32 %v107, 4.0
  %v110 = vmin.f32 %v108, 4.0
  %s111 = scalar_lea.vmem %s1, 64
  %112 = vst [vmem:[%s111] sm:$0xff] %v109
  %113 = vst [vmem:[%s111 + $0x8] sm:$0xff] %v110
  %s114 = scalar_lea.vmem %s0, 80
  %v115 = vld [vmem:[%s114] sm:$0xff]
  %v116 = vld [vmem:[%s114 + $0x8] sm:$0xff]
  %vm117 = vcmp.ge.f32.partialorder %v103, 1.0
  %vm118 = vcmp.ge.f32.partialorder %v104, 1.0
  %v119 = vmul.f32 %v103, 0.25
  %v120 = vmul.f32 %v104, 0.25
  %v121 = vadd.f32 %v119, %v115
  %v122 = vadd.f32 %v120, %v116
  %v123 = vsel %vm117, %v115, %v121
  %v124 = vsel %vm118, %v116, %v122
  %v125 = vfloor.f32 %v123
  %v126 = vfloor.f32 %v124
  %v127 = vmax.f32 %v125, 0.0
  %v128 = vmax.f32 %v126, 0.0
  %v129 = vmin.f32 %v127, 4.0
  %v130 = vmin.f32 %v128, 4.0
  %s131 = scalar_lea.vmem %s1, 80
  %132 = vst [vmem:[%s131] sm:$0xff] %v129
  %133 = vst [vmem:[%s131 + $0x8] sm:$0xff] %v130
  %s134 = scalar_lea.vmem %s0, 96
  %v135 = vld [vmem:[%s134] sm:$0xff]
  %v136 = vld [vmem:[%s134 + $0x8] sm:$0xff]
  %vm137 = vcmp.ge.f32.partialorder %v123, 1.0
  %vm138 = vcmp.ge.f32.partialorder %v124, 1.0
  %v139 = vmul.f32 %v123, 0.25
  %v140 = vmul.f32 %v124, 0.25
  %v141 = vadd.f32 %v139, %v135
  %v142 = vadd.f32 %v140, %v136
  %v143 = vsel %vm137, %v135, %v141
  %v144 = vsel %vm138, %v136, %v142
  %v145 = vfloor.f32 %v143
  %v146 = vfloor.f32 %v144
  %v147 = vmax.f32 %v145, 0.0
  %v148 = vmax.f32 %v146, 0.0
  %v149 = vmin.f32 %v147, 4.0
  %v150 = vmin.f32 %v148, 4.0
  %s151 = scalar_lea.vmem %s1, 96
  %152 = vst [vmem:[%s151] sm:$0xff] %v149
  %153 = vst [vmem:[%s151 + $0x8] sm:$0xff] %v150
  %s154 = scalar_lea.vmem %s0, 112
  %v155 = vld [vmem:[%s154] sm:$0xff]
  %v156 = vld [vmem:[%s154 + $0x8] sm:$0xff]
  %vm157 = vcmp.ge.f32.partialorder %v143, 1.0
  %vm158 = vcmp.ge.f32.partialorder %v144, 1.0
  %v159 = vmul.f32 %v143, 0.25
  %v160 = vmul.f32 %v144, 0.25
  %v161 = vadd.f32 %v159, %v155
  %v162 = vadd.f32 %v160, %v156
  %v163 = vsel %vm157, %v155, %v161
  %v164 = vsel %vm158, %v156, %v162
  %v165 = vfloor.f32 %v163
  %v166 = vfloor.f32 %v164
  %v167 = vmax.f32 %v165, 0.0
  %v168 = vmax.f32 %v166, 0.0
  %v169 = vmin.f32 %v167, 4.0
  %v170 = vmin.f32 %v168, 4.0
  %s171 = scalar_lea.vmem %s1, 112
  %172 = vst [vmem:[%s171] sm:$0xff] %v169
  %173 = vst [vmem:[%s171 + $0x8] sm:$0xff] %v170
  %174 = vst [vmem:[#allocation2] sm:$0xff] %v163
  %175 = vst [vmem:[#allocation2 + $0x8] sm:$0xff] %v164
  // Predicated region
  $region10: #{mem_update_msf.1} parent=0 // pred_check
    _
  $region11: #{mem_update_msf.1} parent=0 // pred_check_branch
    %177 = sbr.rel (0) target = $region13
  $region12: #{mem_update_msf.1} parent=0 // pred_region
    _
  $region13: #{mem_update_msf.1} parent=0 // pred_fallthru
    _
  // Predicated region
  $region14: #{mem_update_msf.1} parent=0 // pred_check
    _
  $region15: #{mem_update_msf.1} parent=0 // pred_check_branch
    %179 = sbr.rel (0) target = $region17
  $region16: #{mem_update_msf.1} parent=0 // pred_region
    _
  $region17: #{mem_update_msf.1} parent=0 // pred_fallthru
    _

</llo_original>
